<compile_context>
chip_gen: v5e
topology: v5e:2x2
jax: 0.10.0
libtpu: 0.0.40
codegen_flags: <defaults>
</compile_context>

<pallas_src>
import functools

import jax
import jax.numpy as jnp
from jax import lax
from jax.experimental import pallas as pl
from jax.experimental.pallas import tpu as pltpu

EPS = 1e-5
NEG_BIG = -1e30


# --------------------------------------------------------------------------
# Fused kernel: drug GCN branch + global max pool + cell-line MLP branch
# --------------------------------------------------------------------------
def _fused_kernel(adj_ref, x_ref, ib_ref, g_ref,
                  w1_ref, b1_ref, s1_ref, t1_ref,
                  w2_ref, b2_ref, s2_ref, t2_ref,
                  wc1_ref, bc1_ref, wc2_ref, bc2_ref,
                  drug_out_ref, cell_out_ref, *, num_graphs):
    f32 = jnp.float32
    bf16 = jnp.bfloat16

    # ---- in-kernel PyG normalization: A_hat = D^-1/2 (A + I) D^-1/2 ----
    adj = adj_ref[...]
    n = adj.shape[0]
    row = lax.broadcasted_iota(jnp.int32, (n, n), 0)
    col = lax.broadcasted_iota(jnp.int32, (n, n), 1)
    a_hat = adj + (row == col).astype(f32)                      # add self loops
    d_row = lax.rsqrt(jnp.sum(a_hat, axis=1, keepdims=True))    # [n, 1]
    d_col = lax.rsqrt(jnp.sum(a_hat, axis=0, keepdims=True))    # [1, n] (A symmetric)
    a_bf = ((a_hat * d_row) * d_col).astype(bf16)

    # ---- GCN layer 1: ReLU(A @ (X W1) + b1), then BN1 as fused scale/shift ----
    xw = jnp.dot(x_ref[...], w1_ref[...], preferred_element_type=f32)
    h = jnp.dot(a_bf, xw.astype(bf16), preferred_element_type=f32) + b1_ref[...]
    h = jnp.maximum(h, 0.0)
    h = h * s1_ref[...] + t1_ref[...]
    # dropout (eval) -> identity

    # ---- GCN layer 2: ReLU(A @ (h W2) + b2), then BN2 as fused scale/shift ----
    hw = jnp.dot(h.astype(bf16), w2_ref[...], preferred_element_type=f32)
    h2 = jnp.dot(a_bf, hw.astype(bf16), preferred_element_type=f32) + b2_ref[...]
    h2 = jnp.maximum(h2, 0.0)
    h2 = h2 * s2_ref[...] + t2_ref[...]

    # ---- vectorized global_max_pool over the nodes of each graph ----
    ib = ib_ref[...]                                            # [1, n] int32
    gids = lax.broadcasted_iota(jnp.int32, (num_graphs, n), 0)  # [B, n]
    bias = jnp.where(ib == gids, 0.0, NEG_BIG).astype(f32)      # [B, n]
    vals = h2[None, :, :] + bias[:, :, None]                    # [B, n, C]
    drug_out_ref[...] = jnp.max(vals, axis=1)                   # one dense store

    # ---- cell-line branch (BN_cell1 already folded into Wc2/bc2) ----
    hc = jnp.dot(g_ref[...], wc1_ref[...], preferred_element_type=f32) + bc1_ref[...]
    hc = jnp.tanh(hc)
    out_c = jnp.dot(hc.astype(bf16), wc2_ref[...], preferred_element_type=f32) + bc2_ref[...]
    cell_out_ref[...] = jnp.maximum(out_c, 0.0)


# --------------------------------------------------------------------------
# Wrapper: padding, BN folding, bf16 casting, single pallas_call
# --------------------------------------------------------------------------
def _bn_fold(gamma, beta, mean, var):
    scale = gamma * lax.rsqrt(var + EPS)
    shift = beta - mean * scale
    return scale, shift


def _pad_cols(a, cols):
    pad = cols - a.shape[-1]
    if pad:
        a = jnp.pad(a, [(0, 0)] * (a.ndim - 1) + [(0, pad)])
    return a


def _round_up(x, m):
    return (x + m - 1) // m * m


@functools.partial(jax.jit, static_argnames=("num_graphs",))
def atom_global_forward(drug_feature, drug_adj_dense, ibatch, gexpr_data,
                        params, num_graphs):
    f32 = jnp.float32
    bf16 = jnp.bfloat16

    n = drug_feature.shape[0]
    b = gexpr_data.shape[0]
    out_dim = params["w2"].shape[1]
    n_pad = _round_up(n, 16)         # bf16 sublane packing
    c_pad = _round_up(out_dim, 128)  # lane-dense output stores

    # ---- pad node axis (padded nodes: zero features, self-loop only,
    #      ibatch = num_graphs so they never match a real graph id) ----
    adj = jnp.pad(drug_adj_dense.astype(f32), ((0, n_pad - n), (0, n_pad - n)))
    x = jnp.pad(drug_feature.astype(f32), ((0, n_pad - n), (0, 0))).astype(bf16)
    ib = jnp.pad(ibatch.astype(jnp.int32), (0, n_pad - n),
                 constant_values=num_graphs).reshape(1, n_pad)

    # ---- fold BN into scale/shift; fold BN_cell1 fully into fc_cell2 ----
    s1, t1 = _bn_fold(params["bn1_g"], params["bn1_b"], params["bn1_m"], params["bn1_v"])
    s2, t2 = _bn_fold(params["bn2_g"], params["bn2_b"], params["bn2_m"], params["bn2_v"])
    sc1, tc1 = _bn_fold(params["bnc1_g"], params["bnc1_b"], params["bnc1_m"], params["bnc1_v"])
    wc2_f = sc1.reshape(-1, 1) * params["wc2"]
    bc2_f = params["bc2"] + tc1 @ params["wc2"]

    # ---- pad output-feature axis to lane width; cast matmul operands ----
    w1 = params["w1"].astype(bf16)
    w2 = _pad_cols(params["w2"], c_pad).astype(bf16)
    b2 = _pad_cols(params["b2"], c_pad)
    s2 = _pad_cols(s2, c_pad)
    t2 = _pad_cols(t2, c_pad)
    wc1 = params["wc1"].astype(bf16)
    wc2_f = _pad_cols(wc2_f, c_pad).astype(bf16)
    bc2_f = _pad_cols(bc2_f, c_pad)
    gexpr = gexpr_data.astype(bf16)

    args = (adj, x, ib, gexpr,
            w1, params["b1"], s1, t1,
            w2, b2, s2, t2,
            wc1, params["bc1"], wc2_f, bc2_f)

    drug_p, cell_p = pl.pallas_call(
        functools.partial(_fused_kernel, num_graphs=num_graphs),
        out_shape=(jax.ShapeDtypeStruct((num_graphs, c_pad), f32),
                   jax.ShapeDtypeStruct((b, c_pad), f32)),
        in_specs=[pl.BlockSpec(memory_space=pltpu.MemorySpace.VMEM)
                  for _ in range(len(args))],
        out_specs=(pl.BlockSpec(memory_space=pltpu.MemorySpace.VMEM),
                   pl.BlockSpec(memory_space=pltpu.MemorySpace.VMEM)),
        compiler_params=pltpu.CompilerParams(
            vmem_limit_bytes=32 * 1024 * 1024),
    )(*args)

    return drug_p[:, :out_dim], cell_p[:, :out_dim]


# --------------------------------------------------------------------------
# Pure-JAX reference (f32) for a sanity check
# --------------------------------------------------------------------------
def _reference_forward(drug_feature, drug_adj, ibatch, gexpr, params, num_graphs):
    n = drug_feature.shape[0]
    a_hat = drug_adj + jnp.eye(n, dtype=jnp.float32)
    dis = 1.0 / jnp.sqrt(jnp.sum(a_hat, axis=1))
    a_norm = dis[:, None] * a_hat * dis[None, :]

    def bn(x, g, b, m, v):
        return (x - m) / jnp.sqrt(v + EPS) * g + b

    h = a_norm @ (drug_feature @ params["w1"]) + params["b1"]
    h = bn(jnp.maximum(h, 0.0), params["bn1_g"], params["bn1_b"],
           params["bn1_m"], params["bn1_v"])
    h2 = a_norm @ (h @ params["w2"]) + params["b2"]
    h2 = bn(jnp.maximum(h2, 0.0), params["bn2_g"], params["bn2_b"],
            params["bn2_m"], params["bn2_v"])
    mask = ibatch[None, :] == jnp.arange(num_graphs)[:, None]
    pooled = jnp.max(jnp.where(mask[:, :, None], h2[None], -jnp.inf), axis=1)

    hc = jnp.tanh(gexpr @ params["wc1"] + params["bc1"])
    hc = bn(hc, params["bnc1_g"], params["bnc1_b"], params["bnc1_m"], params["bnc1_v"])
    cell = jnp.maximum(hc @ params["wc2"] + params["bc2"], 0.0)
    return pooled, cell


def init_params(key, dim_drug, dim_cellline, output, hidden=128):
    ks = jax.random.split(key, 20)
    f32 = jnp.float32

    def rnd(k, shape, scale=0.1):
        return (scale * jax.random.normal(k, shape)).astype(f32)

    return {
        # GCNConv1 (weights stored [in, out])
        "w1": rnd(ks[0], (dim_drug, hidden)),
        "b1": rnd(ks[1], (1, hidden)),
        "bn1_g": 1.0 + rnd(ks[2], (1, hidden)),
        "bn1_b": rnd(ks[3], (1, hidden), 0.05),
        "bn1_m": rnd(ks[4], (1, hidden), 0.05),
        "bn1_v": 1.0 + jnp.abs(rnd(ks[5], (1, hidden))),
        # GCNConv2
        "w2": rnd(ks[6], (hidden, output)),
        "b2": rnd(ks[7], (1, output)),
        "bn2_g": 1.0 + rnd(ks[8], (1, output)),
        "bn2_b": rnd(ks[9], (1, output), 0.05),
        "bn2_m": rnd(ks[10], (1, output), 0.05),
        "bn2_v": 1.0 + jnp.abs(rnd(ks[11], (1, output))),
        # fc_cell1 + batch_cell1
        "wc1": rnd(ks[12], (dim_cellline, hidden)),
        "bc1": rnd(ks[13], (1, hidden)),
        "bnc1_g": 1.0 + rnd(ks[14], (1, hidden)),
        "bnc1_b": rnd(ks[15], (1, hidden), 0.05),
        "bnc1_m": rnd(ks[16], (1, hidden), 0.05),
        "bnc1_v": 1.0 + jnp.abs(rnd(ks[17], (1, hidden))),
        # fc_cell2
        "wc2": rnd(ks[18], (hidden, output)),
        "bc2": rnd(ks[19], (1, output)),
    }


if __name__ == "__main__":
    # Small shapes consistent with the module
    N = 16              # total graph nodes across the batch
    DIM_DRUG = 32       # atom feature dim
    DIM_CELL = 48       # gene expression dim
    OUTPUT = 64
    B = 2               # number of graphs / cell lines

    key = jax.random.PRNGKey(0)
    k_feat, k_adj, k_gex, k_par = jax.random.split(key, 4)

    drug_feature = jax.random.normal(k_feat, (N, DIM_DRUG), dtype=jnp.float32)

    # random symmetric 0/1 adjacency (no self loops; normalization adds them)
    a_rand = (jax.random.uniform(k_adj, (N, N)) > 0.7).astype(jnp.float32)
    drug_adj = jnp.maximum(a_rand, a_rand.T) * (1.0 - jnp.eye(N, dtype=jnp.float32))

    # nodes 0..7 -> graph 0, nodes 8..15 -> graph 1
    ibatch = jnp.concatenate([jnp.zeros(N // 2, jnp.int32),
                              jnp.ones(N - N // 2, jnp.int32)])

    gexpr_data = jax.random.normal(k_gex, (B, DIM_CELL), dtype=jnp.float32)

    params = init_params(k_par, DIM_DRUG, DIM_CELL, OUTPUT)

    x_drug, x_cell = atom_global_forward(drug_feature, drug_adj, ibatch,
                                         gexpr_data, params, num_graphs=B)
    jax.block_until_ready((x_drug, x_cell))

    assert x_drug.shape == (B, OUTPUT) and x_cell.shape == (B, OUTPUT)

    # loose check vs f32 reference (kernel uses bf16 matmul operands)
    r_drug, r_cell = _reference_forward(drug_feature, drug_adj, ibatch,
                                        gexpr_data, params, num_graphs=B)
    assert bool(jnp.allclose(x_drug, r_drug, atol=0.1, rtol=0.1))
    assert bool(jnp.allclose(x_cell, r_cell, atol=0.1, rtol=0.1))

    print("KERNEL_OK")
</pallas_src>

<mosaic_0001>
module attributes {stable_mosaic.version = 11 : i64} {
  func.func @_fused_kernel(%arg0: memref<16x16xf32, #tpu.memory_space<vmem>>, %arg1: memref<16x32xbf16, #tpu.memory_space<vmem>>, %arg2: memref<1x16xi32, #tpu.memory_space<vmem>>, %arg3: memref<2x48xbf16, #tpu.memory_space<vmem>>, %arg4: memref<32x128xbf16, #tpu.memory_space<vmem>>, %arg5: memref<1x128xf32, #tpu.memory_space<vmem>>, %arg6: memref<1x128xf32, #tpu.memory_space<vmem>>, %arg7: memref<1x128xf32, #tpu.memory_space<vmem>>, %arg8: memref<128x128xbf16, #tpu.memory_space<vmem>>, %arg9: memref<1x128xf32, #tpu.memory_space<vmem>>, %arg10: memref<1x128xf32, #tpu.memory_space<vmem>>, %arg11: memref<1x128xf32, #tpu.memory_space<vmem>>, %arg12: memref<48x128xbf16, #tpu.memory_space<vmem>>, %arg13: memref<1x128xf32, #tpu.memory_space<vmem>>, %arg14: memref<128x128xbf16, #tpu.memory_space<vmem>>, %arg15: memref<1x128xf32, #tpu.memory_space<vmem>>, %arg16: memref<2x128xf32, #tpu.memory_space<vmem>>, %arg17: memref<2x128xf32, #tpu.memory_space<vmem>>) attributes {dimension_semantics = [], scalar_prefetch = 0 : i64, scratch_operands = 0 : i64, tpu.core_type = #tpu.core_type<tc>} {
    %c0 = arith.constant 0 : index
    %c0_0 = arith.constant 0 : index
    %0 = vector.load %arg0[%c0, %c0_0] : memref<16x16xf32, #tpu.memory_space<vmem>>, vector<16x16xf32>
    %1 = tpu.iota {dimensions = array<i32: 0>} : vector<16x16xi32>
    %2 = tpu.iota {dimensions = array<i32: 1>} : vector<16x16xi32>
    %3 = arith.cmpi eq, %1, %2 : vector<16x16xi32>
    %4 = arith.extui %3 : vector<16x16xi1> to vector<16x16xi32>
    %5 = arith.sitofp %4 : vector<16x16xi32> to vector<16x16xf32>
    %6 = arith.addf %0, %5 : vector<16x16xf32>
    %cst = arith.constant dense<0.000000e+00> : vector<16xf32>
    %7 = vector.multi_reduction <add>, %6, %cst [1] : vector<16x16xf32> to vector<16xf32>
    %8 = vector.shape_cast %7 : vector<16xf32> to vector<16x1xf32>
    %9 = math.rsqrt %8 : vector<16x1xf32>
    %cst_1 = arith.constant dense<0.000000e+00> : vector<16xf32>
    %10 = vector.multi_reduction <add>, %6, %cst_1 [0] : vector<16x16xf32> to vector<16xf32>
    %11 = vector.shape_cast %10 : vector<16xf32> to vector<1x16xf32>
    %12 = math.rsqrt %11 : vector<1x16xf32>
    %13 = vector.broadcast %9 : vector<16x1xf32> to vector<16x16xf32>
    %14 = arith.mulf %6, %13 : vector<16x16xf32>
    %15 = vector.broadcast %12 : vector<1x16xf32> to vector<16x16xf32>
    %16 = arith.mulf %14, %15 : vector<16x16xf32>
    %17 = arith.truncf %16 : vector<16x16xf32> to vector<16x16xbf16>
    %c0_2 = arith.constant 0 : index
    %c0_3 = arith.constant 0 : index
    %18 = vector.load %arg1[%c0_2, %c0_3] : memref<16x32xbf16, #tpu.memory_space<vmem>>, vector<16x32xbf16>
    %c0_4 = arith.constant 0 : index
    %c0_5 = arith.constant 0 : index
    %19 = vector.load %arg4[%c0_4, %c0_5] : memref<32x128xbf16, #tpu.memory_space<vmem>>, vector<32x128xbf16>
    %cst_6 = arith.constant dense<0.000000e+00> : vector<16x128xf32>
    %20 = tpu.matmul %18, %19, %cst_6 {dimension_numbers = #tpu.dot_dimension_numbers<[1], [0], [0], [1], [0, 0, 1, 1], [], []>} : vector<16x32xbf16>, vector<32x128xbf16>, vector<16x128xf32> -> vector<16x128xf32>
    %21 = arith.truncf %20 : vector<16x128xf32> to vector<16x128xbf16>
    %cst_7 = arith.constant dense<0.000000e+00> : vector<16x128xf32>
    %22 = tpu.matmul %17, %21, %cst_7 {dimension_numbers = #tpu.dot_dimension_numbers<[1], [0], [0], [1], [0, 0, 1, 1], [], []>} : vector<16x16xbf16>, vector<16x128xbf16>, vector<16x128xf32> -> vector<16x128xf32>
    %c0_8 = arith.constant 0 : index
    %c0_9 = arith.constant 0 : index
    %23 = vector.load %arg5[%c0_8, %c0_9] : memref<1x128xf32, #tpu.memory_space<vmem>>, vector<1x128xf32>
    %24 = vector.broadcast %23 : vector<1x128xf32> to vector<16x128xf32>
    %25 = arith.addf %22, %24 : vector<16x128xf32>
    %cst_10 = arith.constant 0.000000e+00 : f32
    %26 = vector.broadcast %cst_10 : f32 to vector<16x128xf32>
    %27 = arith.maximumf %25, %26 : vector<16x128xf32>
    %c0_11 = arith.constant 0 : index
    %c0_12 = arith.constant 0 : index
    %28 = vector.load %arg6[%c0_11, %c0_12] : memref<1x128xf32, #tpu.memory_space<vmem>>, vector<1x128xf32>
    %29 = vector.broadcast %28 : vector<1x128xf32> to vector<16x128xf32>
    %30 = arith.mulf %27, %29 : vector<16x128xf32>
    %c0_13 = arith.constant 0 : index
    %c0_14 = arith.constant 0 : index
    %31 = vector.load %arg7[%c0_13, %c0_14] : memref<1x128xf32, #tpu.memory_space<vmem>>, vector<1x128xf32>
    %32 = vector.broadcast %31 : vector<1x128xf32> to vector<16x128xf32>
    %33 = arith.addf %30, %32 : vector<16x128xf32>
    %34 = arith.truncf %33 : vector<16x128xf32> to vector<16x128xbf16>
    %c0_15 = arith.constant 0 : index
    %c0_16 = arith.constant 0 : index
    %35 = vector.load %arg8[%c0_15, %c0_16] : memref<128x128xbf16, #tpu.memory_space<vmem>>, vector<128x128xbf16>
    %cst_17 = arith.constant dense<0.000000e+00> : vector<16x128xf32>
    %36 = tpu.matmul %34, %35, %cst_17 {dimension_numbers = #tpu.dot_dimension_numbers<[1], [0], [0], [1], [0, 0, 1, 1], [], []>} : vector<16x128xbf16>, vector<128x128xbf16>, vector<16x128xf32> -> vector<16x128xf32>
    %37 = arith.truncf %36 : vector<16x128xf32> to vector<16x128xbf16>
    %cst_18 = arith.constant dense<0.000000e+00> : vector<16x128xf32>
    %38 = tpu.matmul %17, %37, %cst_18 {dimension_numbers = #tpu.dot_dimension_numbers<[1], [0], [0], [1], [0, 0, 1, 1], [], []>} : vector<16x16xbf16>, vector<16x128xbf16>, vector<16x128xf32> -> vector<16x128xf32>
    %c0_19 = arith.constant 0 : index
    %c0_20 = arith.constant 0 : index
    %39 = vector.load %arg9[%c0_19, %c0_20] : memref<1x128xf32, #tpu.memory_space<vmem>>, vector<1x128xf32>
    %40 = vector.broadcast %39 : vector<1x128xf32> to vector<16x128xf32>
    %41 = arith.addf %38, %40 : vector<16x128xf32>
    %cst_21 = arith.constant 0.000000e+00 : f32
    %42 = vector.broadcast %cst_21 : f32 to vector<16x128xf32>
    %43 = arith.maximumf %41, %42 : vector<16x128xf32>
    %c0_22 = arith.constant 0 : index
    %c0_23 = arith.constant 0 : index
    %44 = vector.load %arg10[%c0_22, %c0_23] : memref<1x128xf32, #tpu.memory_space<vmem>>, vector<1x128xf32>
    %45 = vector.broadcast %44 : vector<1x128xf32> to vector<16x128xf32>
    %46 = arith.mulf %43, %45 : vector<16x128xf32>
    %c0_24 = arith.constant 0 : index
    %c0_25 = arith.constant 0 : index
    %47 = vector.load %arg11[%c0_24, %c0_25] : memref<1x128xf32, #tpu.memory_space<vmem>>, vector<1x128xf32>
    %48 = vector.broadcast %47 : vector<1x128xf32> to vector<16x128xf32>
    %49 = arith.addf %46, %48 : vector<16x128xf32>
    %c0_26 = arith.constant 0 : index
    %c0_27 = arith.constant 0 : index
    %50 = vector.load %arg2[%c0_26, %c0_27] : memref<1x16xi32, #tpu.memory_space<vmem>>, vector<1x16xi32>
    %51 = tpu.iota {dimensions = array<i32: 0>} : vector<2x16xi32>
    %52 = vector.broadcast %50 : vector<1x16xi32> to vector<2x16xi32>
    %53 = arith.cmpi eq, %52, %51 : vector<2x16xi32>
    %cst_28 = arith.constant 0.000000e+00 : f32
    %cst_29 = arith.constant -1.000000e+30 : f32
    %54 = vector.broadcast %cst_28 : f32 to vector<2x16xf32>
    %55 = vector.broadcast %cst_29 : f32 to vector<2x16xf32>
    %56 = arith.select %53, %54, %55 : vector<2x16xi1>, vector<2x16xf32>
    %57 = vector.shape_cast %49 : vector<16x128xf32> to vector<1x16x128xf32>
    %58 = vector.shape_cast %56 : vector<2x16xf32> to vector<2x16x1xf32>
    %59 = vector.broadcast %57 : vector<1x16x128xf32> to vector<2x16x128xf32>
    %60 = vector.broadcast %58 : vector<2x16x1xf32> to vector<2x16x128xf32>
    %61 = arith.addf %59, %60 : vector<2x16x128xf32>
    %cst_30 = arith.constant dense<0xFF800000> : vector<2x128xf32>
    %62 = vector.multi_reduction <maximumf>, %61, %cst_30 [1] : vector<2x16x128xf32> to vector<2x128xf32>
    %c0_31 = arith.constant 0 : index
    %c0_32 = arith.constant 0 : index
    %63 = vector.load %arg16[%c0_31, %c0_32] : memref<2x128xf32, #tpu.memory_space<vmem>>, vector<2x128xf32>
    tpu.vector_store %arg16[%c0_31, %c0_32], %62 {strides = array<i32>} : memref<2x128xf32, #tpu.memory_space<vmem>>, vector<2x128xf32>,
    %c0_33 = arith.constant 0 : index
    %c0_34 = arith.constant 0 : index
    %64 = vector.load %arg3[%c0_33, %c0_34] : memref<2x48xbf16, #tpu.memory_space<vmem>>, vector<2x48xbf16>
    %c0_35 = arith.constant 0 : index
    %c0_36 = arith.constant 0 : index
    %65 = vector.load %arg12[%c0_35, %c0_36] : memref<48x128xbf16, #tpu.memory_space<vmem>>, vector<48x128xbf16>
    %cst_37 = arith.constant dense<0.000000e+00> : vector<2x128xf32>
    %66 = tpu.matmul %64, %65, %cst_37 {dimension_numbers = #tpu.dot_dimension_numbers<[1], [0], [0], [1], [0, 0, 1, 1], [], []>} : vector<2x48xbf16>, vector<48x128xbf16>, vector<2x128xf32> -> vector<2x128xf32>
    %c0_38 = arith.constant 0 : index
    %c0_39 = arith.constant 0 : index
    %67 = vector.load %arg13[%c0_38, %c0_39] : memref<1x128xf32, #tpu.memory_space<vmem>>, vector<1x128xf32>
    %68 = vector.broadcast %67 : vector<1x128xf32> to vector<2x128xf32>
    %69 = arith.addf %66, %68 : vector<2x128xf32>
    %70 = math.tanh %69 : vector<2x128xf32>
    %71 = arith.truncf %70 : vector<2x128xf32> to vector<2x128xbf16>
    %c0_40 = arith.constant 0 : index
    %c0_41 = arith.constant 0 : index
    %72 = vector.load %arg14[%c0_40, %c0_41] : memref<128x128xbf16, #tpu.memory_space<vmem>>, vector<128x128xbf16>
    %cst_42 = arith.constant dense<0.000000e+00> : vector<2x128xf32>
    %73 = tpu.matmul %71, %72, %cst_42 {dimension_numbers = #tpu.dot_dimension_numbers<[1], [0], [0], [1], [0, 0, 1, 1], [], []>} : vector<2x128xbf16>, vector<128x128xbf16>, vector<2x128xf32> -> vector<2x128xf32>
    %c0_43 = arith.constant 0 : index
    %c0_44 = arith.constant 0 : index
    %74 = vector.load %arg15[%c0_43, %c0_44] : memref<1x128xf32, #tpu.memory_space<vmem>>, vector<1x128xf32>
    %75 = vector.broadcast %74 : vector<1x128xf32> to vector<2x128xf32>
    %76 = arith.addf %73, %75 : vector<2x128xf32>
    %cst_45 = arith.constant 0.000000e+00 : f32
    %77 = vector.broadcast %cst_45 : f32 to vector<2x128xf32>
    %78 = arith.maximumf %76, %77 : vector<2x128xf32>
    %c0_46 = arith.constant 0 : index
    %c0_47 = arith.constant 0 : index
    %79 = vector.load %arg17[%c0_46, %c0_47] : memref<2x128xf32, #tpu.memory_space<vmem>>, vector<2x128xf32>
    tpu.vector_store %arg17[%c0_46, %c0_47], %78 {strides = array<i32>} : memref<2x128xf32, #tpu.memory_space<vmem>>, vector<2x128xf32>,
    return
  }
}

</mosaic_0001>

<llo_original>
// kernel: atom_global_forward.1
$region0: #{atom_global_forward.1}
  #allocation0 [shape = 'u32[]', space=smem, size = 0x4, offset = 0x4, fixed_abs, tag = 'smem constant byte address 0x4 - core index']
  #allocation1 [shape = 'u32[72,128]{1,0:T(1,128)}', space=vmem, size = 0x9000, scoped, tag = 'internal scratch']
  %s0 = inlined_call_operand.vmem [shape: f32[16,16], index: 0, kind: input, shape index: {}]
  %s1 = inlined_call_operand.vmem [shape: bf16[16,32], index: 1, kind: input, shape index: {}]
  %s2 = inlined_call_operand.vmem [shape: s32[1,16], index: 2, kind: input, shape index: {}]
  %s3 = inlined_call_operand.vmem [shape: bf16[2,48], index: 3, kind: input, shape index: {}]
  %s4 = inlined_call_operand.vmem [shape: bf16[32,128], index: 4, kind: input, shape index: {}]
  %s5 = inlined_call_operand.vmem [shape: f32[1,128], index: 5, kind: input, shape index: {}]
  %s6 = inlined_call_operand.vmem [shape: f32[1,128], index: 6, kind: input, shape index: {}]
  %s7 = inlined_call_operand.vmem [shape: f32[1,128], index: 7, kind: input, shape index: {}]
  %s8 = inlined_call_operand.vmem [shape: bf16[128,128], index: 8, kind: input, shape index: {}]
  %s9 = inlined_call_operand.vmem [shape: f32[1,128], index: 9, kind: input, shape index: {}]
  %s10 = inlined_call_operand.vmem [shape: f32[1,128], index: 10, kind: input, shape index: {}]
  %s11 = inlined_call_operand.vmem [shape: f32[1,128], index: 11, kind: input, shape index: {}]
  %s12 = inlined_call_operand.vmem [shape: bf16[48,128], index: 12, kind: input, shape index: {}]
  %s13 = inlined_call_operand.vmem [shape: f32[1,128], index: 13, kind: input, shape index: {}]
  %s14 = inlined_call_operand.vmem [shape: bf16[128,128], index: 14, kind: input, shape index: {}]
  %s15 = inlined_call_operand.vmem [shape: f32[1,128], index: 15, kind: input, shape index: {}]
  %s16 = inlined_call_operand.hbm [shape: f32[2,128], index: 16, kind: output, shape index: {0}]
  %s17 = inlined_call_operand.hbm [shape: f32[2,128], index: 17, kind: output, shape index: {1}]
  %18 = xla_tuple %s16, %s17
  %s19 = sld [smem:[#allocation0]]
  $region82: #{atom_global_forward.1} parent=0
    _
  %s21 = ssub.s32 1, %s19
  %s22 = scalar_select 0, %s21, %s19
  $region1: #{atom_global_forward.1} parent=0
    #allocation2 [shape = 'u8[1024]{0}', space=vmem, size = 0x400, scoped, tag = 'output window, operand 0, single buffered']
    #allocation3 [shape = 's32[1]{0}', space=sflag, size = 0x4, scoped, tag = 'scoped memory for atom_global_forward.1']
    #allocation4 [shape = 'u8[1024]{0}', space=vmem, size = 0x400, scoped, tag = 'output window, operand 1, single buffered']
    #allocation5 [shape = 's32[1]{0}', space=sflag, size = 0x4, scoped, tag = 'scoped memory for atom_global_forward.1']
    %23 = vsyncpa [#allocation3], 0
    %24 = vsyncpa [#allocation5], 0
    // Predicated region
    $region2: #{atom_global_forward.1} parent=1 // pred_check
      _
    $region3: #{atom_global_forward.1} parent=1 // pred_check_branch
      %26 = sbr.rel (0) target = $region5
    $region4: #{atom_global_forward.1} parent=1 // pred_region
      _
    $region5: #{atom_global_forward.1} parent=1 // pred_fallthru
      _
    // Predicated region
    $region6: #{atom_global_forward.1} parent=1 // pred_check
      _
    $region7: #{atom_global_forward.1} parent=1 // pred_check_branch
      %28 = sbr.rel (0) target = $region9
    $region8: #{atom_global_forward.1} parent=1 // pred_region
      _
    $region9: #{atom_global_forward.1} parent=1 // pred_fallthru
      _
    // Predicated region
    $region10: #{atom_global_forward.1} parent=1 // pred_check
      _
    $region11: #{atom_global_forward.1} parent=1 // pred_check_branch
      %30 = sbr.rel (0) target = $region13
    $region12: #{atom_global_forward.1} parent=1 // pred_region
      _
    $region13: #{atom_global_forward.1} parent=1 // pred_fallthru
      _
    // Predicated region
    $region14: #{atom_global_forward.1} parent=1 // pred_check
      _
    $region15: #{atom_global_forward.1} parent=1 // pred_check_branch
      %32 = sbr.rel (0) target = $region17
    $region16: #{atom_global_forward.1} parent=1 // pred_region
      _
    $region17: #{atom_global_forward.1} parent=1 // pred_fallthru
      _
    // Predicated region
    $region18: #{atom_global_forward.1} parent=1 // pred_check
      _
    $region19: #{atom_global_forward.1} parent=1 // pred_check_branch
      %34 = sbr.rel (0) target = $region21
    $region20: #{atom_global_forward.1} parent=1 // pred_region
      _
    $region21: #{atom_global_forward.1} parent=1 // pred_fallthru
      _
    // Predicated region
    $region22: #{atom_global_forward.1} parent=1 // pred_check
      _
    $region23: #{atom_global_forward.1} parent=1 // pred_check_branch
      %36 = sbr.rel (0) target = $region25
    $region24: #{atom_global_forward.1} parent=1 // pred_region
      _
    $region25: #{atom_global_forward.1} parent=1 // pred_fallthru
      _
    // Predicated region
    $region26: #{atom_global_forward.1} parent=1 // pred_check
      _
    $region27: #{atom_global_forward.1} parent=1 // pred_check_branch
      %38 = sbr.rel (0) target = $region29
    $region28: #{atom_global_forward.1} parent=1 // pred_region
      _
    $region29: #{atom_global_forward.1} parent=1 // pred_fallthru
      _
    // Predicated region
    $region30: #{atom_global_forward.1} parent=1 // pred_check
      _
    $region31: #{atom_global_forward.1} parent=1 // pred_check_branch
      %40 = sbr.rel (0) target = $region33
    $region32: #{atom_global_forward.1} parent=1 // pred_region
      _
    $region33: #{atom_global_forward.1} parent=1 // pred_fallthru
      _
    // Predicated region
    $region34: #{atom_global_forward.1} parent=1 // pred_check
      _
    $region35: #{atom_global_forward.1} parent=1 // pred_check_branch
      %42 = sbr.rel (0) target = $region37
    $region36: #{atom_global_forward.1} parent=1 // pred_region
      _
    $region37: #{atom_global_forward.1} parent=1 // pred_fallthru
      _
    // Predicated region
    $region38: #{atom_global_forward.1} parent=1 // pred_check
      _
    $region39: #{atom_global_forward.1} parent=1 // pred_check_branch
      %44 = sbr.rel (0) target = $region41
    $region40: #{atom_global_forward.1} parent=1 // pred_region
      _
    $region41: #{atom_global_forward.1} parent=1 // pred_fallthru
      _
    // Predicated region
    $region42: #{atom_global_forward.1} parent=1 // pred_check
      _
    $region43: #{atom_global_forward.1} parent=1 // pred_check_branch
      %46 = sbr.rel (0) target = $region45
    $region44: #{atom_global_forward.1} parent=1 // pred_region
      _
    $region45: #{atom_global_forward.1} parent=1 // pred_fallthru
      _
    // Predicated region
    $region46: #{atom_global_forward.1} parent=1 // pred_check
      _
    $region47: #{atom_global_forward.1} parent=1 // pred_check_branch
      %48 = sbr.rel (0) target = $region49
    $region48: #{atom_global_forward.1} parent=1 // pred_region
      _
    $region49: #{atom_global_forward.1} parent=1 // pred_fallthru
      _
    // Predicated region
    $region50: #{atom_global_forward.1} parent=1 // pred_check
      _
    $region51: #{atom_global_forward.1} parent=1 // pred_check_branch
      %50 = sbr.rel (0) target = $region53
    $region52: #{atom_global_forward.1} parent=1 // pred_region
      _
    $region53: #{atom_global_forward.1} parent=1 // pred_fallthru
      _
    // Predicated region
    $region54: #{atom_global_forward.1} parent=1 // pred_check
      _
    $region55: #{atom_global_forward.1} parent=1 // pred_check_branch
      %52 = sbr.rel (0) target = $region57
    $region56: #{atom_global_forward.1} parent=1 // pred_region
      _
    $region57: #{atom_global_forward.1} parent=1 // pred_fallthru
      _
    // Predicated region
    $region58: #{atom_global_forward.1} parent=1 // pred_check
      _
    $region59: #{atom_global_forward.1} parent=1 // pred_check_branch
      %54 = sbr.rel (0) target = $region61
    $region60: #{atom_global_forward.1} parent=1 // pred_region
      _
    $region61: #{atom_global_forward.1} parent=1 // pred_fallthru
      _
    // Predicated region
    $region62: #{atom_global_forward.1} parent=1 // pred_check
      _
    $region63: #{atom_global_forward.1} parent=1 // pred_check_branch
      %56 = sbr.rel (0) target = $region65
    $region64: #{atom_global_forward.1} parent=1 // pred_region
      _
    $region65: #{atom_global_forward.1} parent=1 // pred_fallthru
      _
    %v58 = vld [vmem:[%s0] sm:$0xff]
    %v59 = vld [vmem:[%s0 + $0x8] sm:$0xff]
    %v60 = vlaneseq
    %v61 = vshrl.u32 %v60, 7
    %v62 = vadd.s32 %v61, 8
    %v63 = vlaneseq
    %v64 = vand.u32 %v63, 127
    %vm65 = vcmp.eq.s32.totalorder %v61, %v64
    %vm66 = vcmp.eq.s32.totalorder %v62, %v64
    %v67 = vsel %vm65, 1, 0
    %v68 = vsel %vm66, 1, 0
    %v69 = vcvt.s32.f32 %v67
    %v70 = vcvt.s32.f32 %v68
    %v71 = vadd.f32 %v58, %v69
    %v72 = vadd.f32 %v59, %v70
    %vm73 = vcmask 130048
    %v74 = vsel %vm73, %v71, 0.0
    %75 = vadd.xlane.f32.xlu0 %v74
    %v76 = vpop.xlane.xlu0 %75
    %v77 = vsel %vm73, %v72, 0.0
    %78 = vadd.xlane.f32.xlu0 %v77
    %v79 = vpop.xlane.xlu0 %78
    %v80 = vrsqrt.pop %v76
    %v81 = vmul.f32 %v80, %v76
    %v82 = vmul.f32 %v81, %v80
    %v83 = vmul.f32 0.5, %v82
    %v84 = vsub.f32 1.5, %v83
    %v85 = vmul.f32 %v80, %v84
    %vm86 = vweird.f32 %v76
    %vm87 = vweird.f32 %v80
    %vm88 = vmor %vm86, %vm87
    %v89 = vsel %vm88, %v80, %v85
    %v90 = vrsqrt.pop %v79
    %v91 = vmul.f32 %v90, %v79
    %v92 = vmul.f32 %v91, %v90
    %v93 = vmul.f32 0.5, %v92
    %v94 = vsub.f32 1.5, %v93
    %v95 = vmul.f32 %v90, %v94
    %vm96 = vweird.f32 %v79
    %vm97 = vweird.f32 %v90
    %vm98 = vmor %vm96, %vm97
    %v99 = vsel %vm98, %v90, %v95
    %v100 = vadd.f32 %v74, %v77
    %v101 = vrot.slane %v100, 4
    %v102 = vadd.f32 %v100, %v101
    %v103 = vrot.slane %v102, 2
    %v104 = vadd.f32 %v102, %v103
    %v105 = vrot.slane %v104, 1
    %v106 = vadd.f32 %v104, %v105
    %v107 = vrsqrt.pop %v106
    %v108 = vmul.f32 %v107, %v106
    %v109 = vmul.f32 %v108, %v107
    %v110 = vmul.f32 0.5, %v109
    %v111 = vsub.f32 1.5, %v110
    %v112 = vmul.f32 %v107, %v111
    %vm113 = vweird.f32 %v106
    %vm114 = vweird.f32 %v107
    %vm115 = vmor %vm113, %vm114
    %v116 = vsel %vm115, %v107, %v112
    %v117 = vmul.f32 %v71, %v89
    %v118 = vmul.f32 %v72, %v99
    %v119 = vmul.f32 %v117, %v116
    %v120 = vmul.f32 %v118, %v116
    %v121 = vpack.c.bf16 %v120, %v119
    %v122 = vld [vmem:[%s1] sm:$0xf]
    %v123 = vld [vmem:[%s1 + $0x4] sm:$0xf]
    %v124 = vld [vmem:[%s4] sm:$0xf]
    %v125 = vld [vmem:[%s4 + $0x4] sm:$0xf]
    %v126 = vld [vmem:[%s4 + $0x8] sm:$0xf]
    %v127 = vld [vmem:[%s4 + $0xc] sm:$0xf]
    %v130 = vunpack.c.l.b16 %v122
    %v131 = vunpack.c.l.b16 %v123
    %v132 = vpack.c.b16 %v131, %v130
    %v137 = vunpack.c.l.b16 %v124
    %v138 = vunpack.c.l.b16 %v125
    %v139 = vunpack.c.l.b16 %v126
    %v140 = vunpack.c.l.b16 %v127
    %v141 = vpack.c.b16 %v138, %v137
    %v142 = vpack.c.b16 %v140, %v139
    %vm145 = vcmask 261120
    %v147 = vsel %vm145, %v132, 0
    %149 = vmatpush.bf16.msra.mxu0 0
    %150 = vmatpush.bf16.msra.mxu0 0
    %151 = vmatpush.bf16.msra.mxu0 0
    %152 = vmatpush.bf16.msra.mxu0 0
    %153 = vmatpush.bf16.msra.mxu0 0
    %154 = vmatpush.bf16.msra.mxu0 0
    %155 = vmatpush.bf16.msra.mxu0 %v142
    %156 = vmatpush.bf16.msra.mxu0 %v141
    %157 = vmatmul.bf16.gmra.mxu0 %v147
    %v158 = vpop.f32.mrf.mxu0
    %v159 = vadd.f32 0.0, %v158
    %v160 = vpop.f32.mrf.mxu0
    %v161 = vadd.f32 0.0, %v160
    %162 = vdwg.mxu0
    %v163 = vpack.c.bf16 %v161, %v159
    %v164 = vld [vmem:[%s5] sm:$0x1]
    %v166 = vperm.slane %v164, 0
    %v169 = vsel %vm73, %v121, 0
    %171 = vmatpush.bf16.msra.mxu0 0
    %172 = vmatpush.bf16.msra.mxu0 0
    %173 = vmatpush.bf16.msra.mxu0 0
    %174 = vmatpush.bf16.msra.mxu0 0
    %175 = vmatpush.bf16.msra.mxu0 0
    %176 = vmatpush.bf16.msra.mxu0 0
    %177 = vmatpush.bf16.msra.mxu0 0
    %178 = vmatpush.bf16.msra.mxu0 %v163
    %179 = vmatmul.bf16.gmra.mxu0 %v169
    %v180 = vpop.f32.mrf.mxu0
    %v181 = vadd.f32 %v166, %v180
    %v182 = vpop.f32.mrf.mxu0
    %v183 = vadd.f32 %v166, %v182
    %184 = vdwg.mxu0
    %v185 = vmax.f32 %v181, 0.0
    %v186 = vmax.f32 %v183, 0.0
    %v187 = vld [vmem:[%s6] sm:$0x1]
    %v189 = vperm.slane %v187, 0
    %v191 = vmul.f32 %v185, %v189
    %v192 = vmul.f32 %v186, %v189
    %v193 = vld [vmem:[%s7] sm:$0x1]
    %v195 = vperm.slane %v193, 0
    %v197 = vadd.f32 %v191, %v195
    %v198 = vadd.f32 %v192, %v195
    %v199 = vpack.c.bf16 %v198, %v197
    %v200 = vld [vmem:[%s8] sm:$0xf]
    %v201 = vld [vmem:[%s8 + $0x4] sm:$0xf]
    %v202 = vld [vmem:[%s8 + $0x8] sm:$0xf]
    %v203 = vld [vmem:[%s8 + $0xc] sm:$0xf]
    %v204 = vld [vmem:[%s8 + $0x10] sm:$0xf]
    %v205 = vld [vmem:[%s8 + $0x14] sm:$0xf]
    %v206 = vld [vmem:[%s8 + $0x18] sm:$0xf]
    %v207 = vld [vmem:[%s8 + $0x1c] sm:$0xf]
    %v208 = vld [vmem:[%s8 + $0x20] sm:$0xf]
    %v209 = vld [vmem:[%s8 + $0x24] sm:$0xf]
    %v210 = vld [vmem:[%s8 + $0x28] sm:$0xf]
    %v211 = vld [vmem:[%s8 + $0x2c] sm:$0xf]
    %v212 = vld [vmem:[%s8 + $0x30] sm:$0xf]
    %v213 = vld [vmem:[%s8 + $0x34] sm:$0xf]
    %v214 = vld [vmem:[%s8 + $0x38] sm:$0xf]
    %v215 = vld [vmem:[%s8 + $0x3c] sm:$0xf]
    %v232 = vunpack.c.l.b16 %v200
    %v233 = vunpack.c.l.b16 %v201
    %v234 = vunpack.c.l.b16 %v202
    %v235 = vunpack.c.l.b16 %v203
    %v236 = vunpack.c.l.b16 %v204
    %v237 = vunpack.c.l.b16 %v205
    %v238 = vunpack.c.l.b16 %v206
    %v239 = vunpack.c.l.b16 %v207
    %v240 = vunpack.c.l.b16 %v208
    %v241 = vunpack.c.l.b16 %v209
    %v242 = vunpack.c.l.b16 %v210
    %v243 = vunpack.c.l.b16 %v211
    %v244 = vunpack.c.l.b16 %v212
    %v245 = vunpack.c.l.b16 %v213
    %v246 = vunpack.c.l.b16 %v214
    %v247 = vunpack.c.l.b16 %v215
    %v248 = vpack.c.b16 %v233, %v232
    %v249 = vpack.c.b16 %v235, %v234
    %v250 = vpack.c.b16 %v237, %v236
    %v251 = vpack.c.b16 %v239, %v238
    %v252 = vpack.c.b16 %v241, %v240
    %v253 = vpack.c.b16 %v243, %v242
    %v254 = vpack.c.b16 %v245, %v244
    %v255 = vpack.c.b16 %v247, %v246
    %264 = vmatpush.bf16.msra.mxu0 %v255
    %265 = vmatpush.bf16.msra.mxu0 %v254
    %266 = vmatpush.bf16.msra.mxu0 %v253
    %267 = vmatpush.bf16.msra.mxu0 %v252
    %268 = vmatpush.bf16.msra.mxu0 %v251
    %269 = vmatpush.bf16.msra.mxu0 %v250
    %270 = vmatpush.bf16.msra.mxu0 %v249
    %271 = vmatpush.bf16.msra.mxu0 %v248
    %272 = vmatmul.bf16.gmra.mxu0 %v199
    %v273 = vpop.f32.mrf.mxu0
    %v274 = vadd.f32 0.0, %v273
    %v275 = vpop.f32.mrf.mxu0
    %v276 = vadd.f32 0.0, %v275
    %277 = vdwg.mxu0
    %v278 = vpack.c.bf16 %v276, %v274
    %v279 = vld [vmem:[%s9] sm:$0x1]
    %v281 = vperm.slane %v279, 0
    %283 = vmatpush.bf16.msra.mxu0 0
    %284 = vmatpush.bf16.msra.mxu0 0
    %285 = vmatpush.bf16.msra.mxu0 0
    %286 = vmatpush.bf16.msra.mxu0 0
    %287 = vmatpush.bf16.msra.mxu0 0
    %288 = vmatpush.bf16.msra.mxu0 0
    %289 = vmatpush.bf16.msra.mxu0 0
    %290 = vmatpush.bf16.msra.mxu0 %v278
    %291 = vmatmul.bf16.gmra.mxu0 %v169
    %v292 = vpop.f32.mrf.mxu0
    %v293 = vadd.f32 %v281, %v292
    %v294 = vpop.f32.mrf.mxu0
    %v295 = vadd.f32 %v281, %v294
    %296 = vdwg.mxu0
    %v297 = vmax.f32 %v293, 0.0
    %v298 = vmax.f32 %v295, 0.0
    %v299 = vld [vmem:[%s10] sm:$0x1]
    %v301 = vperm.slane %v299, 0
    %v303 = vmul.f32 %v297, %v301
    %v304 = vmul.f32 %v298, %v301
    %v305 = vld [vmem:[%s11] sm:$0x1]
    %v307 = vperm.slane %v305, 0
    %v309 = vadd.f32 %v303, %v307
    %v310 = vadd.f32 %v304, %v307
    %v311 = vld [vmem:[%s2] sm:$0x1]
    %v312 = vperm.slane %v311, 0
    %vm313 = vcmp.eq.s32.totalorder %v312, %v61
    %v314 = vsel %vm313, 0.0, -1e+30
    %v315 = vperm.slane %v314, 0
    %v316 = vlaneseq
    %v317 = vshrl.u32 %v316, 7
    %319 = vset.pattern.permute.xlu0 %v317
    %320 = vperm.xlu0 %319, %v315
    %v321 = vpop.permute.xlu0 %320
    %v322 = vlaneseq
    %v323 = vshrl.u32 %v322, 7
    %v324 = vadd.s32 %v323, 8
    %325 = vset.pattern.permute.xlu0 %v324
    %326 = vperm.xlu0 %325, %v315
    %v327 = vpop.permute.xlu0 %326
    %v328 = vperm.slane %v314, 1
    %v329 = vlaneseq
    %v330 = vshrl.u32 %v329, 7
    %332 = vset.pattern.permute.xlu0 %v330
    %333 = vperm.xlu0 %332, %v328
    %v334 = vpop.permute.xlu0 %333
    %v335 = vlaneseq
    %v336 = vshrl.u32 %v335, 7
    %v337 = vadd.s32 %v336, 8
    %338 = vset.pattern.permute.xlu0 %v337
    %339 = vperm.xlu0 %338, %v328
    %v340 = vpop.permute.xlu0 %339
    %v341 = vadd.f32 %v309, %v321
    %v342 = vadd.f32 %v310, %v327
    %v343 = vadd.f32 %v309, %v334
    %v344 = vadd.f32 %v310, %v340
    %v345 = vmax.f32 %v341, %v342
    %v346 = vrot.slane %v345, 4
    %v347 = vmax.f32 %v345, %v346
    %v348 = vrot.slane %v347, 2
    %v349 = vmax.f32 %v347, %v348
    %v350 = vrot.slane %v349, 1
    %v351 = vmax.f32 %v349, %v350
    %v352 = vmax.f32 %v343, %v344
    %v353 = vrot.slane %v352, 4
    %v354 = vmax.f32 %v352, %v353
    %v355 = vrot.slane %v354, 2
    %v356 = vmax.f32 %v354, %v355
    %v357 = vrot.slane %v356, 1
    %v358 = vmax.f32 %v356, %v357
    %vm361 = vcmask 1041409
    %v362 = vsel %vm361, %v358, %v351
    %364 = vst [vmem:[#allocation2] sm:$0x3] %v362
    %v365 = vld [vmem:[%s3] sm:$0x1]
    %v366 = vld [vmem:[%s12] sm:$0xf]
    %v367 = vld [vmem:[%s12 + $0x4] sm:$0xf]
    %v368 = vld [vmem:[%s12 + $0x8] sm:$0xf]
    %v369 = vld [vmem:[%s12 + $0xc] sm:$0xf]
    %v370 = vld [vmem:[%s12 + $0x10] sm:$0xf]
    %v371 = vld [vmem:[%s12 + $0x14] sm:$0xf]
    %v372 = vld [vmem:[%s13] sm:$0x1]
    %v374 = vperm.slane %v372, 0
    %v382 = vunpack.c.l.b16 %v366
    %v383 = vunpack.c.l.b16 %v367
    %v384 = vunpack.c.l.b16 %v368
    %v385 = vunpack.c.l.b16 %v369
    %v386 = vunpack.c.l.b16 %v370
    %v387 = vunpack.c.l.b16 %v371
    %v388 = vpack.c.b16 %v383, %v382
    %v389 = vpack.c.b16 %v385, %v384
    %v390 = vpack.c.b16 %v387, %v386
    %vm394 = vcmask 392192
    %v396 = vsel %vm394, %v365, 0
    %398 = vmatpush.bf16.msra.mxu0 0
    %399 = vmatpush.bf16.msra.mxu0 0
    %400 = vmatpush.bf16.msra.mxu0 0
    %401 = vmatpush.bf16.msra.mxu0 0
    %402 = vmatpush.bf16.msra.mxu0 0
    %403 = vmatpush.bf16.msra.mxu0 %v390
    %404 = vmatpush.bf16.msra.mxu0 %v389
    %405 = vmatpush.bf16.msra.mxu0 %v388
    %406 = vmatmul.bf16.gmra.mxu0 %v396
    %v407 = vpop.f32.mrf.mxu0
    %v408 = vadd.f32 %v374, %v407
    %v409 = vpop.f32.mrf.mxu0
    %410 = vdwg.mxu0
    %v411 = vtanh.pop %v408
    %v412 = vpack.c.bf16 %v411, %v411
    %v413 = vld [vmem:[%s14] sm:$0xf]
    %v414 = vld [vmem:[%s14 + $0x4] sm:$0xf]
    %v415 = vld [vmem:[%s14 + $0x8] sm:$0xf]
    %v416 = vld [vmem:[%s14 + $0xc] sm:$0xf]
    %v417 = vld [vmem:[%s14 + $0x10] sm:$0xf]
    %v418 = vld [vmem:[%s14 + $0x14] sm:$0xf]
    %v419 = vld [vmem:[%s14 + $0x18] sm:$0xf]
    %v420 = vld [vmem:[%s14 + $0x1c] sm:$0xf]
    %v421 = vld [vmem:[%s14 + $0x20] sm:$0xf]
    %v422 = vld [vmem:[%s14 + $0x24] sm:$0xf]
    %v423 = vld [vmem:[%s14 + $0x28] sm:$0xf]
    %v424 = vld [vmem:[%s14 + $0x2c] sm:$0xf]
    %v425 = vld [vmem:[%s14 + $0x30] sm:$0xf]
    %v426 = vld [vmem:[%s14 + $0x34] sm:$0xf]
    %v427 = vld [vmem:[%s14 + $0x38] sm:$0xf]
    %v428 = vld [vmem:[%s14 + $0x3c] sm:$0xf]
    %v429 = vld [vmem:[%s15] sm:$0x1]
    %v431 = vperm.slane %v429, 0
    %v449 = vunpack.c.l.b16 %v413
    %v450 = vunpack.c.l.b16 %v414
    %v451 = vunpack.c.l.b16 %v415
    %v452 = vunpack.c.l.b16 %v416
    %v453 = vunpack.c.l.b16 %v417
    %v454 = vunpack.c.l.b16 %v418
    %v455 = vunpack.c.l.b16 %v419
    %v456 = vunpack.c.l.b16 %v420
    %v457 = vunpack.c.l.b16 %v421
    %v458 = vunpack.c.l.b16 %v422
    %v459 = vunpack.c.l.b16 %v423
    %v460 = vunpack.c.l.b16 %v424
    %v461 = vunpack.c.l.b16 %v425
    %v462 = vunpack.c.l.b16 %v426
    %v463 = vunpack.c.l.b16 %v427
    %v464 = vunpack.c.l.b16 %v428
    %v465 = vpack.c.b16 %v450, %v449
    %v466 = vpack.c.b16 %v452, %v451
    %v467 = vpack.c.b16 %v454, %v453
    %v468 = vpack.c.b16 %v456, %v455
    %v469 = vpack.c.b16 %v458, %v457
    %v470 = vpack.c.b16 %v460, %v459
    %v471 = vpack.c.b16 %v462, %v461
    %v472 = vpack.c.b16 %v464, %v463
    %481 = vmatpush.bf16.msra.mxu0 %v472
    %482 = vmatpush.bf16.msra.mxu0 %v471
    %483 = vmatpush.bf16.msra.mxu0 %v470
    %484 = vmatpush.bf16.msra.mxu0 %v469
    %485 = vmatpush.bf16.msra.mxu0 %v468
    %486 = vmatpush.bf16.msra.mxu0 %v467
    %487 = vmatpush.bf16.msra.mxu0 %v466
    %488 = vmatpush.bf16.msra.mxu0 %v465
    %489 = vmatmul.bf16.gmra.mxu0 %v412
    %v490 = vpop.f32.mrf.mxu0
    %v491 = vadd.f32 %v431, %v490
    %v492 = vpop.f32.mrf.mxu0
    %493 = vdwg.mxu0
    %v494 = vmax.f32 %v491, 0.0
    %495 = vst [vmem:[#allocation4] sm:$0x3] %v494
    // Predicated region
    $region66: #{atom_global_forward.1} parent=1 // pred_check
      _
    $region67: #{atom_global_forward.1} parent=1 // pred_check_branch
      %497 = sbr.rel (0) target = $region69
    $region68: #{atom_global_forward.1} parent=1 // pred_region
      %499 = vsyncadd [#allocation3], 0
      %s501 = sshll.u32 [#allocation2], 4
      %s502 = int_to_ptr.vmem [resolvable:$true] %s501
      %s503 = sshll.u32 %s16, 4
      %s504 = int_to_ptr.hbm [resolvable:$true] %s503
      %506 = dma.vmem_to_hbm [thread:$0]  %s502, 32, %s504, [#allocation3]
    $region69: #{atom_global_forward.1} parent=1 // pred_fallthru
      _
    // Predicated region
    $region70: #{atom_global_forward.1} parent=1 // pred_check
      _
    $region71: #{atom_global_forward.1} parent=1 // pred_check_branch
      %508 = sbr.rel (0) target = $region73
    $region72: #{atom_global_forward.1} parent=1 // pred_region
      %510 = vsyncadd [#allocation5], 0
      %s512 = sshll.u32 [#allocation4], 4
      %s513 = int_to_ptr.vmem [resolvable:$true] %s512
      %s514 = sshll.u32 %s17, 4
      %s515 = int_to_ptr.hbm [resolvable:$true] %s514
      %517 = dma.vmem_to_hbm [thread:$0]  %s513, 32, %s515, [#allocation5]
    $region73: #{atom_global_forward.1} parent=1 // pred_fallthru
      _
    // Predicated region
    $region74: #{atom_global_forward.1} parent=1 // pred_check
      _
    $region75: #{atom_global_forward.1} parent=1 // pred_check_branch
      %519 = sbr.rel (0) target = $region77
    $region76: #{atom_global_forward.1} parent=1 // pred_region
      %521 = dma.done [#allocation3], 32
    $region77: #{atom_global_forward.1} parent=1 // pred_fallthru
      _
    // Predicated region
    $region78: #{atom_global_forward.1} parent=1 // pred_check
      _
    $region79: #{atom_global_forward.1} parent=1 // pred_check_branch
      %523 = sbr.rel (0) target = $region81
    $region80: #{atom_global_forward.1} parent=1 // pred_region
      %525 = dma.done [#allocation5], 32
    $region81: #{atom_global_forward.1} parent=1 // pred_fallthru
      _
    %526 = vsyncpa [#allocation3], 1
    %527 = vsyncpa [#allocation5], 1

</llo_original>
